<compile_context>
chip_gen: v7x
topology: tpu7x:2x2x1
jax: 0.10.0
libtpu: 0.0.40
codegen_flags: <defaults>
</compile_context>

<pallas_src>
import functools

import jax
import jax.numpy as jnp
from jax.experimental import pallas as pl
from jax.experimental.pallas import tpu as pltpu

NUM_CORES = 2                          # v7x has 2 TCs; no-op on v5e/v6e
TARGET_BLOCK_BYTES = 2 * 1024 * 1024   # ~2 MiB f32 per input block (VMEM-safe everywhere)


def _loss_kernel(s_ref, t_ref, osq_ref, oabs_ref, acc_sq, acc_abs,
                 *, rows, tile_rows, blocks_per_core):
    i = pl.program_id(1)

    @pl.when(i == 0)
    def _():
        acc_sq[...] = jnp.zeros(acc_sq.shape, acc_sq.dtype)
        acc_abs[...] = jnp.zeros(acc_abs.shape, acc_abs.dtype)

    # Row-validity mask: the intended global block may be ragged at the tail,
    # or lie fully past the array for the clamped duplicate on the second core.
    blk = pl.program_id(0) * blocks_per_core + i
    row0 = blk * tile_rows
    row_ids = row0 + jax.lax.broadcasted_iota(jnp.int32, s_ref.shape, 0)
    valid = row_ids < rows

    diff = s_ref[...].astype(jnp.float32) - t_ref[...].astype(jnp.float32)
    diff = jnp.where(valid, diff, 0.0)

    # Elementwise (VPU-only) accumulation; defer the XLU reduce to the end.
    acc_sq[...] += diff * diff
    acc_abs[...] += jnp.abs(diff)

    @pl.when(i == pl.num_programs(1) - 1)
    def _():
        ones = jnp.ones(osq_ref.shape, jnp.float32)   # lane-dense full-tile store
        osq_ref[...] = jnp.sum(acc_sq[...]) * ones
        oabs_ref[...] = jnp.sum(acc_abs[...]) * ones


def pallas_loss(sample, truth):
    assert sample.shape == truth.shape
    n_elems = int(sample.size)

    flat_s = jnp.ravel(sample)
    flat_t = jnp.ravel(truth)

    # Wide lane dim; avoid any host-side padding when a 128-multiple divides N.
    lane_w = next((w for w in (1024, 512, 256, 128) if n_elems % w == 0), None)
    if lane_w is None:
        lane_w = 1024
        padded = pl.cdiv(n_elems, lane_w) * lane_w
        flat_s = jnp.pad(flat_s, (0, padded - n_elems))   # zeros contribute 0 to both sums
        flat_t = jnp.pad(flat_t, (0, padded - n_elems))
    else:
        padded = n_elems
    rows = padded // lane_w
    s2d = flat_s.reshape(rows, lane_w)
    t2d = flat_t.reshape(rows, lane_w)

    target_rows = max(8, TARGET_BLOCK_BYTES // (lane_w * 4))
    # Block never exceeds the array: full-extent block for small inputs,
    # multiple-of-8 row tiles (ragged tail masked in-kernel) for large ones.
    tile_rows = rows if rows <= target_rows else target_rows
    total_blocks = pl.cdiv(rows, tile_rows)
    blocks_per_core = pl.cdiv(total_blocks, NUM_CORES)

    def in_map(c, i):
        # Clamp so the DMA source is always in range; the kernel masks by the
        # *intended* block index, so clamped duplicates contribute nothing.
        return (jnp.minimum(c * blocks_per_core + i, total_blocks - 1), 0)

    kernel = functools.partial(_loss_kernel, rows=rows, tile_rows=tile_rows,
                               blocks_per_core=blocks_per_core)

    out_sq, out_abs = pl.pallas_call(
        kernel,
        out_shape=(
            jax.ShapeDtypeStruct((NUM_CORES, 8, 128), jnp.float32),
            jax.ShapeDtypeStruct((NUM_CORES, 8, 128), jnp.float32),
        ),
        grid_spec=pltpu.PrefetchScalarGridSpec(
            num_scalar_prefetch=0,
            grid=(NUM_CORES, blocks_per_core),
            in_specs=[
                pl.BlockSpec((tile_rows, lane_w), in_map),
                pl.BlockSpec((tile_rows, lane_w), in_map),
            ],
            out_specs=[
                pl.BlockSpec((1, 8, 128), lambda c, i: (c, 0, 0)),
                pl.BlockSpec((1, 8, 128), lambda c, i: (c, 0, 0)),
            ],
            scratch_shapes=[
                pltpu.VMEM((tile_rows, lane_w), jnp.float32),
                pltpu.VMEM((tile_rows, lane_w), jnp.float32),
            ],
        ),
        compiler_params=pltpu.CompilerParams(
            dimension_semantics=("parallel", "arbitrary"),
            vmem_limit_bytes=32 * 1024 * 1024,
        ),
    )(s2d, t2d)

    sum_sq = jnp.sum(out_sq[:, 0, 0])
    sum_abs = jnp.sum(out_abs[:, 0, 0])
    inv_n = jnp.float32(1.0 / n_elems)
    rmse = jnp.sqrt(sum_sq * inv_n)
    mae = sum_abs * inv_n
    return 0.5 * rmse + 0.5 * mae


def _ref_loss(sample, truth):
    d = sample.astype(jnp.float32) - truth.astype(jnp.float32)
    return 0.5 * jnp.sqrt(jnp.mean(d * d)) + 0.5 * jnp.mean(jnp.abs(d))


if __name__ == "__main__":
    key = jax.random.PRNGKey(0)
    k1, k2 = jax.random.split(key)
    # Shapes consistent with a typical NCHW prediction/target pair.
    sample = jax.random.normal(k1, (2, 4, 16, 16), dtype=jnp.float32)
    truth = jax.random.normal(k2, (2, 4, 16, 16), dtype=jnp.float32)

    loss = pallas_loss(sample, truth)
    jax.block_until_ready(loss)
    ref = _ref_loss(sample, truth)
    assert jnp.allclose(loss, ref, rtol=1e-4, atol=1e-6), (loss, ref)

    # Extra coverage: multi-block ragged edge split across both cores, and a
    # non-128-divisible element count (minimal-pad path).
    for idx, shape in enumerate([(1000, 1024), (3, 5, 7, 11)]):
        ka, kb = jax.random.split(jax.random.PRNGKey(idx + 1))
        s = jax.random.normal(ka, shape, dtype=jnp.float32)
        t = jax.random.normal(kb, shape, dtype=jnp.float32)
        got = pallas_loss(s, t)
        jax.block_until_ready(got)
        want = _ref_loss(s, t)
        assert jnp.allclose(got, want, rtol=1e-4, atol=1e-6), (shape, got, want)

    print("KERNEL_OK")
</pallas_src>

<mosaic_0001>
module attributes {stable_mosaic.version = 11 : i64} {
  func.func @_loss_kernel(%arg0: i32, %arg1: i32, %arg2: memref<2x1024xf32, #tpu.memory_space<vmem>>, %arg3: memref<2x1024xf32, #tpu.memory_space<vmem>>, %arg4: memref<1x8x128xf32, #tpu.memory_space<vmem>>, %arg5: memref<1x8x128xf32, #tpu.memory_space<vmem>>, %arg6: memref<2x1024xf32, #tpu.memory_space<vmem>>, %arg7: memref<2x1024xf32, #tpu.memory_space<vmem>>) attributes {dimension_semantics = [#tpu.dimension_semantics<parallel>, #tpu.dimension_semantics<arbitrary>], iteration_bounds = array<i64: 2, 1>, scalar_prefetch = 0 : i64, scratch_operands = 2 : i64, tpu.core_type = #tpu.core_type<tc>, window_params = [{transform_indices = @transform_0, window_bounds = array<i64: 2, 1024>}, {transform_indices = @transform_1, window_bounds = array<i64: 2, 1024>}, {transform_indices = @transform_2, window_bounds = array<i64: 1, 8, 128>}, {transform_indices = @transform_3, window_bounds = array<i64: 1, 8, 128>}]} {
    %c0_i32 = arith.constant 0 : i32
    %0 = arith.cmpi eq, %arg1, %c0_i32 : i32
    %1 = arith.extui %0 : i1 to i32
    %c0_i32_0 = arith.constant 0 : i32
    %2 = arith.cmpi ne, %1, %c0_i32_0 : i32
    scf.if %2 {
      %cst_15 = arith.constant 0.000000e+00 : f32
      %27 = vector.broadcast %cst_15 : f32 to vector<2x1024xf32>
      %c0_16 = arith.constant 0 : index
      %c0_17 = arith.constant 0 : index
      %28 = vector.load %arg6[%c0_16, %c0_17] : memref<2x1024xf32, #tpu.memory_space<vmem>>, vector<2x1024xf32>
      tpu.vector_store %arg6[%c0_16, %c0_17], %27 {strides = array<i32>} : memref<2x1024xf32, #tpu.memory_space<vmem>>, vector<2x1024xf32>,
      %cst_18 = arith.constant 0.000000e+00 : f32
      %29 = vector.broadcast %cst_18 : f32 to vector<2x1024xf32>
      %c0_19 = arith.constant 0 : index
      %c0_20 = arith.constant 0 : index
      %30 = vector.load %arg7[%c0_19, %c0_20] : memref<2x1024xf32, #tpu.memory_space<vmem>>, vector<2x1024xf32>
      tpu.vector_store %arg7[%c0_19, %c0_20], %29 {strides = array<i32>} : memref<2x1024xf32, #tpu.memory_space<vmem>>, vector<2x1024xf32>,
    } else {
    }
    %c1_i32 = arith.constant 1 : i32
    %3 = arith.muli %arg0, %c1_i32 : i32
    %4 = arith.addi %3, %arg1 : i32
    %c2_i32 = arith.constant 2 : i32
    %5 = arith.muli %4, %c2_i32 : i32
    %6 = tpu.iota {dimensions = array<i32: 0>} : vector<2x1024xi32>
    %7 = vector.broadcast %5 : i32 to vector<2x1024xi32>
    %8 = arith.addi %7, %6 : vector<2x1024xi32>
    %c2_i32_1 = arith.constant 2 : i32
    %9 = vector.broadcast %c2_i32_1 : i32 to vector<2x1024xi32>
    %10 = arith.cmpi slt, %8, %9 : vector<2x1024xi32>
    %c0 = arith.constant 0 : index
    %c0_2 = arith.constant 0 : index
    %11 = vector.load %arg2[%c0, %c0_2] : memref<2x1024xf32, #tpu.memory_space<vmem>>, vector<2x1024xf32>
    %c0_3 = arith.constant 0 : index
    %c0_4 = arith.constant 0 : index
    %12 = vector.load %arg3[%c0_3, %c0_4] : memref<2x1024xf32, #tpu.memory_space<vmem>>, vector<2x1024xf32>
    %13 = arith.subf %11, %12 : vector<2x1024xf32>
    %cst = arith.constant 0.000000e+00 : f32
    %14 = vector.broadcast %cst : f32 to vector<2x1024xf32>
    %15 = arith.select %10, %13, %14 : vector<2x1024xi1>, vector<2x1024xf32>
    %c0_5 = arith.constant 0 : index
    %c0_6 = arith.constant 0 : index
    %16 = vector.load %arg6[%c0_5, %c0_6] : memref<2x1024xf32, #tpu.memory_space<vmem>>, vector<2x1024xf32>
    %17 = arith.mulf %15, %15 : vector<2x1024xf32>
    %18 = arith.addf %16, %17 : vector<2x1024xf32>
    %c0_7 = arith.constant 0 : index
    %c0_8 = arith.constant 0 : index
    %19 = vector.load %arg6[%c0_7, %c0_8] : memref<2x1024xf32, #tpu.memory_space<vmem>>, vector<2x1024xf32>
    tpu.vector_store %arg6[%c0_7, %c0_8], %18 {strides = array<i32>} : memref<2x1024xf32, #tpu.memory_space<vmem>>, vector<2x1024xf32>,
    %c0_9 = arith.constant 0 : index
    %c0_10 = arith.constant 0 : index
    %20 = vector.load %arg7[%c0_9, %c0_10] : memref<2x1024xf32, #tpu.memory_space<vmem>>, vector<2x1024xf32>
    %21 = math.absf %15 : vector<2x1024xf32>
    %22 = arith.addf %20, %21 : vector<2x1024xf32>
    %c0_11 = arith.constant 0 : index
    %c0_12 = arith.constant 0 : index
    %23 = vector.load %arg7[%c0_11, %c0_12] : memref<2x1024xf32, #tpu.memory_space<vmem>>, vector<2x1024xf32>
    tpu.vector_store %arg7[%c0_11, %c0_12], %22 {strides = array<i32>} : memref<2x1024xf32, #tpu.memory_space<vmem>>, vector<2x1024xf32>,
    %c0_i32_13 = arith.constant 0 : i32
    %24 = arith.cmpi eq, %arg1, %c0_i32_13 : i32
    %25 = arith.extui %24 : i1 to i32
    %c0_i32_14 = arith.constant 0 : i32
    %26 = arith.cmpi ne, %25, %c0_i32_14 : i32
    scf.if %26 {
      %cst_15 = arith.constant 1.000000e+00 : f32
      %27 = vector.broadcast %cst_15 : f32 to vector<1x8x128xf32>
      %c0_16 = arith.constant 0 : index
      %c0_17 = arith.constant 0 : index
      %28 = vector.load %arg6[%c0_16, %c0_17] : memref<2x1024xf32, #tpu.memory_space<vmem>>, vector<2x1024xf32>
      %29 = vector.shape_cast %28 : vector<2x1024xf32> to vector<1x2x1024xf32>
      %cst_18 = arith.constant dense<0.000000e+00> : vector<1xf32>
      %30 = vector.multi_reduction <add>, %29, %cst_18 [1, 2] : vector<1x2x1024xf32> to vector<1xf32>
      %31 = vector.shape_cast %30 : vector<1xf32> to vector<1x1x1xf32>
      %32 = vector.extract %31[0, 0, 0] : f32 from vector<1x1x1xf32>
      %33 = vector.broadcast %32 : f32 to vector<1x8x128xf32>
      %34 = arith.mulf %33, %27 : vector<1x8x128xf32>
      %c0_19 = arith.constant 0 : index
      %c0_20 = arith.constant 0 : index
      %c0_21 = arith.constant 0 : index
      %35 = vector.load %arg4[%c0_19, %c0_20, %c0_21] : memref<1x8x128xf32, #tpu.memory_space<vmem>>, vector<1x8x128xf32>
      tpu.vector_store %arg4[%c0_19, %c0_20, %c0_21], %34 {strides = array<i32>} : memref<1x8x128xf32, #tpu.memory_space<vmem>>, vector<1x8x128xf32>,
      %c0_22 = arith.constant 0 : index
      %c0_23 = arith.constant 0 : index
      %36 = vector.load %arg7[%c0_22, %c0_23] : memref<2x1024xf32, #tpu.memory_space<vmem>>, vector<2x1024xf32>
      %37 = vector.shape_cast %36 : vector<2x1024xf32> to vector<1x2x1024xf32>
      %cst_24 = arith.constant dense<0.000000e+00> : vector<1xf32>
      %38 = vector.multi_reduction <add>, %37, %cst_24 [1, 2] : vector<1x2x1024xf32> to vector<1xf32>
      %39 = vector.shape_cast %38 : vector<1xf32> to vector<1x1x1xf32>
      %40 = vector.extract %39[0, 0, 0] : f32 from vector<1x1x1xf32>
      %41 = vector.broadcast %40 : f32 to vector<1x8x128xf32>
      %42 = arith.mulf %41, %27 : vector<1x8x128xf32>
      %c0_25 = arith.constant 0 : index
      %c0_26 = arith.constant 0 : index
      %c0_27 = arith.constant 0 : index
      %43 = vector.load %arg5[%c0_25, %c0_26, %c0_27] : memref<1x8x128xf32, #tpu.memory_space<vmem>>, vector<1x8x128xf32>
      tpu.vector_store %arg5[%c0_25, %c0_26, %c0_27], %42 {strides = array<i32>} : memref<1x8x128xf32, #tpu.memory_space<vmem>>, vector<1x8x128xf32>,
    } else {
    }
    return
  }
  func.func @transform_0(%arg0: i32, %arg1: i32) -> (i32, i32) {
    %c1_i32 = arith.constant 1 : i32
    %0 = arith.muli %arg0, %c1_i32 : i32
    %1 = arith.addi %0, %arg1 : i32
    %c0_i32 = arith.constant 0 : i32
    %2 = arith.minsi %1, %c0_i32 : i32
    %c0_i32_0 = arith.constant 0 : i32
    %c0_i32_1 = arith.constant 0 : i32
    return %2, %c0_i32_0 : i32, i32
  }
  func.func @transform_1(%arg0: i32, %arg1: i32) -> (i32, i32) {
    %c1_i32 = arith.constant 1 : i32
    %0 = arith.muli %arg0, %c1_i32 : i32
    %1 = arith.addi %0, %arg1 : i32
    %c0_i32 = arith.constant 0 : i32
    %2 = arith.minsi %1, %c0_i32 : i32
    %c0_i32_0 = arith.constant 0 : i32
    %c0_i32_1 = arith.constant 0 : i32
    return %2, %c0_i32_0 : i32, i32
  }
  func.func @transform_2(%arg0: i32, %arg1: i32) -> (i32, i32, i32) {
    %c0_i32 = arith.constant 0 : i32
    %c0_i32_0 = arith.constant 0 : i32
    %c0_i32_1 = arith.constant 0 : i32
    return %arg0, %c0_i32, %c0_i32_0 : i32, i32, i32
  }
  func.func @transform_3(%arg0: i32, %arg1: i32) -> (i32, i32, i32) {
    %c0_i32 = arith.constant 0 : i32
    %c0_i32_0 = arith.constant 0 : i32
    %c0_i32_1 = arith.constant 0 : i32
    return %arg0, %c0_i32, %c0_i32_0 : i32, i32, i32
  }
}

</mosaic_0001>

<llo_original>
// kernel: tpu_custom_call.1
$region0: #{tpu_custom_call.1}
  #allocation0 [shape = 'u32[]', space=smem, size = 0x4, offset = 0x4, fixed_abs, tag = 'smem constant byte address 0x4 - core index']
  #allocation1 [shape = 'u32[144,128]{1,0:T(1,128)}', space=vmem, size = 0x12000, scoped, tag = 'internal scratch']
  #allocation2 [shape = 'f32[2,1024]{1,0:T(2,128)}', space=vmem, size = 0x2000, scoped, tag = 'scratch operand']
  #allocation3 [shape = 'f32[2,1024]{1,0:T(2,128)}', space=vmem, size = 0x2000, scoped, tag = 'scratch operand']
  %s0 = inlined_call_operand.hbm [shape: f32[2,1024], index: 0, kind: input, shape index: {}]
  %s1 = inlined_call_operand.hbm [shape: f32[2,1024], index: 1, kind: input, shape index: {}]
  %s2 = inlined_call_operand.hbm [shape: f32[2,8,128], index: 2, kind: output, shape index: {0}]
  %s3 = inlined_call_operand.hbm [shape: f32[2,8,128], index: 3, kind: output, shape index: {1}]
  %4 = xla_tuple %s2, %s3
  %s5 = sld [smem:[#allocation0]]
  $region65: #{tpu_custom_call.1} parent=0
    _
  %s7 = ssub.s32 1, %s5
  %s8 = scalar_select 0, %s7, %s5
  $region1: #{tpu_custom_call.1} parent=0
    #allocation4 [shape = 'u8[16384]{0}', space=vmem, size = 0x4000, scoped, tag = 'input window, operand 0']
    #allocation5 [shape = 's32[2]{0}', space=sflag, size = 0x8, scoped, tag = 'scoped memory for tpu_custom_call.1']
    #allocation6 [shape = 's32[2]{0}', space=sflag, size = 0x8, scoped, tag = 'scoped memory for tpu_custom_call.1']
    #allocation7 [shape = 'u8[16384]{0}', space=vmem, size = 0x4000, scoped, tag = 'input window, operand 1']
    #allocation8 [shape = 's32[2]{0}', space=sflag, size = 0x8, scoped, tag = 'scoped memory for tpu_custom_call.1']
    #allocation9 [shape = 'u8[8192]{0}', space=vmem, size = 0x2000, scoped, tag = 'output window, operand 0']
    #allocation10 [shape = 'u8[8192]{0}', space=vmem, size = 0x2000, scoped, tag = 'output window, operand 1']
    #allocation11 [shape = 's32[2]{0}', space=sflag, size = 0x8, scoped, tag = 'scoped memory for tpu_custom_call.1']
    %9 = vsyncpa [#allocation5], 0
    %s10 = scalar_lea.sflag [#allocation5], 1
    %11 = vsyncpa %s10, 0
    %12 = vsyncpa [#allocation8], 0
    %s13 = scalar_lea.sflag [#allocation8], 1
    %14 = vsyncpa %s13, 0
    %15 = vsyncpa [#allocation6], 0
    %s16 = scalar_lea.sflag [#allocation6], 1
    %17 = vsyncpa %s16, 0
    %18 = vsyncpa [#allocation11], 0
    %s19 = scalar_lea.sflag [#allocation11], 1
    %20 = vsyncpa %s19, 0
    loop: start=0, step=1, limit=4
    $region2: #{tpu_custom_call.1} parent=1 // loop_pre_header
      _
    $region3: #{tpu_custom_call.1} parent=1 // loop_header
      %s22 = sphi 0, %s26
      %p23 = scmp.ge.s32.totalorder %s22, 4
      %s29 = sphi 0, %s41
      %s30 = sphi 0, %s37
      %s31 = sphi 0, %s29
      %s32 = sphi 0, %s30
      %s33 = sphi 0, %s31
      %s34 = sphi 0, %s32
      %s50 = sphi 0, %s52
      %s53 = sphi 0, %s50
      %s54 = sphi 0, %s53
      %s70 = sphi 0, %s54
      %s82 = sphi 0, %s84
      %s85 = sphi 0, %s82
      %s86 = sphi 0, %s85
      %s102 = sphi 0, %s86
      %s108 = sphi 0, %s110
      %s111 = sphi 0, %s108
      %s112 = sphi 0, %s111
      %s128 = sphi 0, %s112
      %s134 = sphi 0, %s136
      %s137 = sphi 0, %s134
      %s138 = sphi 0, %s137
      %s154 = sphi 0, %s138
    $region4: #{tpu_custom_call.1} parent=1 // loop_header_branch
      %25 = sbr.rel (%p23) target = $region8
    $region5: #{tpu_custom_call.1} parent=1 // loop_body
      %s27 = ssub.s32 %s22, 1
      %s28 = ssub.s32 %s22, 2
      %s35 = sadd.s32 1, %s30
      %p36 = scmp.ge.s32.totalorder %s35, 1
      %s37 = scalar_select %p36, 0, %s35
      %s38 = sadd.s32 1, %s29
      %s39 = scalar_select %p36, %s38, %s29
      %p40 = scmp.ge.s32.totalorder %s39, 2
      %s41 = scalar_select %p40, 0, %s39
      %s42 = sadd.s32 %s29, %s30
      %p43 = scmp.lt.s32.totalorder %s42, 0
      %s44 = scalar_select %p43, %s42, 0
      %s45 = sadd.s32 %s41, %s37
      %p46 = scmp.lt.s32.totalorder %s45, 0
      %s47 = scalar_select %p46, %s45, 0
      %s48 = ssub.s32 %s44, %s47
      %p49 = scmp.eq.s32.totalorder %s48, 0
      %s51 = sadd.s32 %s50, 1
      %s52 = scalar_select %p49, %s50, %s51
      %p55 = pneg %p49
      %p56 = scmp.eq.s32.totalorder %s22, 1
      %p57 = por %p55, %p56
      %p58 = scmp.ne.s32.totalorder %s50, %s53
      %p59 = scmp.eq.s32.totalorder %s22, 0
      %p60 = por %p58, %p59
      %p61 = scmp.ne.s32.totalorder %s50, %s53
      %p62 = scmp.eq.s32.totalorder %s27, 1
      %p63 = por %p61, %p62
      %p64 = scmp.ne.s32.totalorder %s53, %s54
      %p65 = scmp.eq.s32.totalorder %s27, 0
      %p66 = por %p64, %p65
      %p67 = scmp.ne.s32.totalorder %s53, %s54
      %p68 = scmp.eq.s32.totalorder %s28, 1
      %p69 = por %p67, %p68
      %p71 = scmp.ne.s32.totalorder %s54, %s70
      %p72 = scmp.eq.s32.totalorder %s28, 0
      %p73 = por %p71, %p72
      %s74 = sadd.s32 %s29, %s30
      %p75 = scmp.lt.s32.totalorder %s74, 0
      %s76 = scalar_select %p75, %s74, 0
      %s77 = sadd.s32 %s41, %s37
      %p78 = scmp.lt.s32.totalorder %s77, 0
      %s79 = scalar_select %p78, %s77, 0
      %s80 = ssub.s32 %s76, %s79
      %p81 = scmp.eq.s32.totalorder %s80, 0
      %s83 = sadd.s32 %s82, 1
      %s84 = scalar_select %p81, %s82, %s83
      %p87 = pneg %p81
      %p88 = scmp.eq.s32.totalorder %s22, 1
      %p89 = por %p87, %p88
      %p90 = scmp.ne.s32.totalorder %s82, %s85
      %p91 = scmp.eq.s32.totalorder %s22, 0
      %p92 = por %p90, %p91
      %p93 = scmp.ne.s32.totalorder %s82, %s85
      %p94 = scmp.eq.s32.totalorder %s27, 1
      %p95 = por %p93, %p94
      %p96 = scmp.ne.s32.totalorder %s85, %s86
      %p97 = scmp.eq.s32.totalorder %s27, 0
      %p98 = por %p96, %p97
      %p99 = scmp.ne.s32.totalorder %s85, %s86
      %p100 = scmp.eq.s32.totalorder %s28, 1
      %p101 = por %p99, %p100
      %p103 = scmp.ne.s32.totalorder %s86, %s102
      %p104 = scmp.eq.s32.totalorder %s28, 0
      %p105 = por %p103, %p104
      %s106 = ssub.s32 %s29, %s41
      %p107 = scmp.eq.s32.totalorder %s106, 0
      %s109 = sadd.s32 %s108, 1
      %s110 = scalar_select %p107, %s108, %s109
      %p113 = pneg %p107
      %p114 = scmp.eq.s32.totalorder %s22, 1
      %p115 = por %p113, %p114
      %p116 = scmp.ne.s32.totalorder %s108, %s111
      %p117 = scmp.eq.s32.totalorder %s22, 0
      %p118 = por %p116, %p117
      %p119 = scmp.ne.s32.totalorder %s108, %s111
      %p120 = scmp.eq.s32.totalorder %s27, 1
      %p121 = por %p119, %p120
      %p122 = scmp.ne.s32.totalorder %s111, %s112
      %p123 = scmp.eq.s32.totalorder %s27, 0
      %p124 = por %p122, %p123
      %p125 = scmp.ne.s32.totalorder %s111, %s112
      %p126 = scmp.eq.s32.totalorder %s28, 1
      %p127 = por %p125, %p126
      %p129 = scmp.ne.s32.totalorder %s112, %s128
      %p130 = scmp.eq.s32.totalorder %s28, 0
      %p131 = por %p129, %p130
      %s132 = ssub.s32 %s29, %s41
      %p133 = scmp.eq.s32.totalorder %s132, 0
      %s135 = sadd.s32 %s134, 1
      %s136 = scalar_select %p133, %s134, %s135
      %p139 = pneg %p133
      %p140 = scmp.eq.s32.totalorder %s22, 1
      %p141 = por %p139, %p140
      %p142 = scmp.ne.s32.totalorder %s134, %s137
      %p143 = scmp.eq.s32.totalorder %s22, 0
      %p144 = por %p142, %p143
      %p145 = scmp.ne.s32.totalorder %s134, %s137
      %p146 = scmp.eq.s32.totalorder %s27, 1
      %p147 = por %p145, %p146
      %p148 = scmp.ne.s32.totalorder %s137, %s138
      %p149 = scmp.eq.s32.totalorder %s27, 0
      %p150 = por %p148, %p149
      %p151 = scmp.ne.s32.totalorder %s137, %s138
      %p152 = scmp.eq.s32.totalorder %s28, 1
      %p153 = por %p151, %p152
      %p155 = scmp.ne.s32.totalorder %s138, %s154
      %p156 = scmp.eq.s32.totalorder %s28, 0
      %p157 = por %p155, %p156
      %p158 = scmp.le.s32.totalorder 1, %s22
      %p159 = scmp.lt.s32.totalorder %s22, 3
      %p160 = pnand %p158, %p159
      %p161 = pneg %p160
      // Predicated region
      $region9: #{tpu_custom_call.1} parent=5 // pred_check
        _
      $region10: #{tpu_custom_call.1} parent=5 // pred_check_branch
        %163 = sbr.rel (%p160) target = $region12
      $region11: #{tpu_custom_call.1} parent=5 // pred_region
        %s164 = ssub.s32 %s22, 1
      $region12: #{tpu_custom_call.1} parent=5 // pred_fallthru
        _
      %p165 = scmp.lt.s32.totalorder %s22, 2
      // Predicated region
      $region13: #{tpu_custom_call.1} parent=5 // pred_check
        %p166 = pneg %p165
      $region14: #{tpu_custom_call.1} parent=5 // pred_check_branch
        %168 = sbr.rel (%p166) target = $region16
      $region15: #{tpu_custom_call.1} parent=5 // pred_region
        // Predicated region
        $region17: #{tpu_custom_call.1} parent=15 // pred_check
          %p169 = pneg %p60
        $region18: #{tpu_custom_call.1} parent=15 // pred_check_branch
          %171 = sbr.rel (%p169) target = $region20
        $region19: #{tpu_custom_call.1} parent=15 // pred_region
          %s172 = sand.u32 %s50, 1
          %s173 = scalar_lea.sflag [#allocation5], %s172
          %s174 = sand.u32 %s50, 1
          %s175 = smul.addr %s174, 16
          %s176 = scalar_lea.vmem [#allocation4], %s175
          %s177 = sadd.s32 %s29, %s30
          %p178 = scmp.lt.s32.totalorder %s177, 0
          %s179 = scalar_select %p178, %s177, 0
          %s181 = ssub.s32 256, 256
          %182 = vsyncadd %s173, %s181
          %s183 = smul.addr %s179, 8
          %s184 = smul.addr %s183, 32
          %s185 = scalar_lea.hbm %s0, %s184
          %s187 = sshll.u32 %s176, 4
          %s188 = int_to_ptr.vmem [resolvable:$true] %s187
          %190 = dma.hbm_to_vmem [thread:$0]  %s185, 256, %s188, %s173
        $region20: #{tpu_custom_call.1} parent=15 // pred_fallthru
          _
        // Predicated region
        $region21: #{tpu_custom_call.1} parent=15 // pred_check
          %p191 = pneg %p92
        $region22: #{tpu_custom_call.1} parent=15 // pred_check_branch
          %193 = sbr.rel (%p191) target = $region24
        $region23: #{tpu_custom_call.1} parent=15 // pred_region
          %s194 = sand.u32 %s82, 1
          %s195 = scalar_lea.sflag [#allocation8], %s194
          %s196 = sand.u32 %s82, 1
          %s197 = smul.addr %s196, 16
          %s198 = scalar_lea.vmem [#allocation7], %s197
          %s199 = sadd.s32 %s29, %s30
          %p200 = scmp.lt.s32.totalorder %s199, 0
          %s201 = scalar_select %p200, %s199, 0
          %s203 = ssub.s32 256, 256
          %204 = vsyncadd %s195, %s203
          %s205 = smul.addr %s201, 8
          %s206 = smul.addr %s205, 32
          %s207 = scalar_lea.hbm %s1, %s206
          %s209 = sshll.u32 %s198, 4
          %s210 = int_to_ptr.vmem [resolvable:$true] %s209
          %212 = dma.hbm_to_vmem [thread:$0]  %s207, 256, %s210, %s195
        $region24: #{tpu_custom_call.1} parent=15 // pred_fallthru
          _
      $region16: #{tpu_custom_call.1} parent=5 // pred_fallthru
        _
      %p213 = scmp.le.s32.totalorder 1, %s22
      %p214 = scmp.lt.s32.totalorder %s22, 3
      %p215 = pnand %p213, %p214
      %p216 = pneg %p215
      // Predicated region
      $region25: #{tpu_custom_call.1} parent=5 // pred_check
        _
      $region26: #{tpu_custom_call.1} parent=5 // pred_check_branch
        %218 = sbr.rel (%p215) target = $region28
      $region27: #{tpu_custom_call.1} parent=5 // pred_region
        %s219 = ssub.s32 %s22, 1
        %s220 = sand.u32 %s53, 1
        %s221 = scalar_lea.sflag [#allocation5], %s220
        %s222 = sand.u32 %s53, 1
        %s223 = smul.addr %s222, 16
        %s224 = scalar_lea.vmem [#allocation4], %s223
        // Predicated region
        $region29: #{tpu_custom_call.1} parent=27 // pred_check
          %p225 = pneg %p66
        $region30: #{tpu_custom_call.1} parent=27 // pred_check_branch
          %227 = sbr.rel (%p225) target = $region32
        $region31: #{tpu_custom_call.1} parent=27 // pred_region
          %228 = dma.done %s221, 256
        $region32: #{tpu_custom_call.1} parent=27 // pred_fallthru
          _
        %s229 = sand.u32 %s85, 1
        %s230 = scalar_lea.sflag [#allocation8], %s229
        %s231 = sand.u32 %s85, 1
        %s232 = smul.addr %s231, 16
        %s233 = scalar_lea.vmem [#allocation7], %s232
        // Predicated region
        $region33: #{tpu_custom_call.1} parent=27 // pred_check
          %p234 = pneg %p98
        $region34: #{tpu_custom_call.1} parent=27 // pred_check_branch
          %236 = sbr.rel (%p234) target = $region36
        $region35: #{tpu_custom_call.1} parent=27 // pred_region
          %237 = dma.done %s230, 256
        $region36: #{tpu_custom_call.1} parent=27 // pred_fallthru
          _
        %s238 = sand.u32 %s53, 1
        %s239 = scalar_lea.sflag [#allocation5], %s238
        %s240 = sand.u32 %s53, 1
        %s241 = smul.addr %s240, 16
        %s242 = scalar_lea.vmem [#allocation4], %s241
        %p243 = pneg %p66
        %p244 = pneg %p63
        %s245 = sand.u32 %s85, 1
        %s246 = scalar_lea.sflag [#allocation8], %s245
        %s247 = sand.u32 %s85, 1
        %s248 = smul.addr %s247, 16
        %s249 = scalar_lea.vmem [#allocation7], %s248
        %p250 = pneg %p98
        %p251 = pneg %p95
        %p252 = pneg %p124
        %p253 = pneg %p121
        %s254 = sand.u32 %s111, 1
        %s255 = scalar_lea.sflag [#allocation6], %s254
        %s256 = sand.u32 %s111, 1
        %s257 = smul.addr %s256, 8
        %s258 = scalar_lea.vmem [#allocation9], %s257
        %p259 = pneg %p150
        %p260 = pneg %p147
        %s261 = sand.u32 %s137, 1
        %s262 = scalar_lea.sflag [#allocation11], %s261
        %s263 = sand.u32 %s137, 1
        %s264 = smul.addr %s263, 8
        %s265 = scalar_lea.vmem [#allocation10], %s264
        %s266 = sadd.s32 %s31, %s32
        %p267 = scmp.lt.s32.totalorder %s266, 0
        %s268 = scalar_select %p267, %s266, 0
        %s269 = sadd.s32 %s31, %s32
        %p270 = scmp.lt.s32.totalorder %s269, 0
        %s271 = scalar_select %p270, %s269, 0
        %p272 = scmp.eq.s32.totalorder %s32, 0
        // Predicated region
        $region37: #{tpu_custom_call.1} parent=27 // pred_check
          %p273 = pneg %p272
        $region38: #{tpu_custom_call.1} parent=27 // pred_check_branch
          %275 = sbr.rel (%p273) target = $region40
        $region39: #{tpu_custom_call.1} parent=27 // pred_region
          %276 = vst [vmem:[#allocation2] sm:$0xff] 0.0
          %277 = vst [vmem:[#allocation2 + $0x8] sm:$0xff] 0.0
          %278 = vst [vmem:[#allocation3] sm:$0xff] 0.0
          %279 = vst [vmem:[#allocation3 + $0x8] sm:$0xff] 0.0
        $region40: #{tpu_custom_call.1} parent=27 // pred_fallthru
          _
        %s280 = sadd.s32 %s31, %s32
        %s281 = smul.u32 %s280, 2
        %v282 = vlaneseq
        %v283 = vshrl.u32 %v282, 7
        %v284 = vstv %s281
        %v285 = vadd.s32 %v284, %v283
        %vm286 = vcmp.lt.s32.totalorder %v285, 2
        %v287 = vld [vmem:[%s224] sm:$0xff]
        %v288 = vld [vmem:[%s224 + $0x8] sm:$0xff]
        %v289 = vld [vmem:[%s233] sm:$0xff]
        %v290 = vld [vmem:[%s233 + $0x8] sm:$0xff]
        %v291 = vsub.f32 %v287, %v289
        %v292 = vsub.f32 %v288, %v290
        %v295 = vcombine.high %v291, %v291
        %v297 = vunpack.c.l.s4 1983009808
        %v298 = vunpack.c.0.s8 %v297
        %v299 = vlaneseq
        %v300 = vshrl.u32 %v299, 7
        %v301 = vsub.s32 %v298, %v300
        %v302 = vrot.slane %v291, %v301
        %v304 = vunpack.c.l.s4 1983009808
        %v305 = vunpack.c.0.s8 %v304
        %v306 = vlaneseq
        %v307 = vshrl.u32 %v306, 7
        %v308 = vsub.s32 %v305, %v307
        %v309 = vrot.slane %v295, %v308
        %v310 = vcombine.high %v302, %v302
        %v311 = vcombine.high %v309, %v309
        %v312 = vcombine.high %v292, %v292
        %v314 = vunpack.c.l.s4 1983009808
        %v315 = vunpack.c.0.s8 %v314
        %v316 = vlaneseq
        %v317 = vshrl.u32 %v316, 7
        %v318 = vsub.s32 %v315, %v317
        %v319 = vrot.slane %v292, %v318
        %v321 = vunpack.c.l.s4 1983009808
        %v322 = vunpack.c.0.s8 %v321
        %v323 = vlaneseq
        %v324 = vshrl.u32 %v323, 7
        %v325 = vsub.s32 %v322, %v324
        %v326 = vrot.slane %v312, %v325
        %v327 = vcombine.high %v319, %v319
        %v328 = vcombine.high %v326, %v326
        %v337 = vsel %vm286, %v302, 0.0
        %v338 = vsel %vm286, %v310, 0.0
        %v339 = vsel %vm286, %v309, 0.0
        %v340 = vsel %vm286, %v311, 0.0
        %v341 = vsel %vm286, %v319, 0.0
        %v342 = vsel %vm286, %v327, 0.0
        %v343 = vsel %vm286, %v326, 0.0
        %v344 = vsel %vm286, %v328, 0.0
        %v345 = vld [vmem:[#allocation2] sm:$0xff]
        %v346 = vld [vmem:[#allocation2 + $0x8] sm:$0xff]
        %v347 = vmul.f32 %v337, %v337
        %v348 = vmul.f32 %v338, %v338
        %v349 = vmul.f32 %v339, %v339
        %v350 = vmul.f32 %v340, %v340
        %v351 = vmul.f32 %v341, %v341
        %v352 = vmul.f32 %v342, %v342
        %v353 = vmul.f32 %v343, %v343
        %v354 = vmul.f32 %v344, %v344
        %v363 = vcombine.low %v347, %v348
        %v364 = vcombine.low %v349, %v350
        %v366 = vunpack.c.l.s4 1983009808
        %v367 = vunpack.c.0.s8 %v366
        %v368 = vlaneseq
        %v369 = vshrl.u32 %v368, 7
        %v370 = vsub.s32 %v367, %v369
        %v371 = vrot.slane %v363, %v370
        %v373 = vunpack.c.l.s4 1983009808
        %v374 = vunpack.c.0.s8 %v373
        %v375 = vlaneseq
        %v376 = vshrl.u32 %v375, 7
        %v377 = vsub.s32 %v374, %v376
        %v378 = vrot.slane %v364, %v377
        %v379 = vcombine.low %v371, %v378
        %v380 = vcombine.low %v351, %v352
        %v381 = vcombine.low %v353, %v354
        %v383 = vunpack.c.l.s4 1983009808
        %v384 = vunpack.c.0.s8 %v383
        %v385 = vlaneseq
        %v386 = vshrl.u32 %v385, 7
        %v387 = vsub.s32 %v384, %v386
        %v388 = vrot.slane %v380, %v387
        %v390 = vunpack.c.l.s4 1983009808
        %v391 = vunpack.c.0.s8 %v390
        %v392 = vlaneseq
        %v393 = vshrl.u32 %v392, 7
        %v394 = vsub.s32 %v391, %v393
        %v395 = vrot.slane %v381, %v394
        %v396 = vcombine.low %v388, %v395
        %v399 = vadd.f32 %v345, %v379
        %v400 = vadd.f32 %v346, %v396
        %401 = vst [vmem:[#allocation2] sm:$0xff] %v399
        %402 = vst [vmem:[#allocation2 + $0x8] sm:$0xff] %v400
        %v403 = vld [vmem:[#allocation3] sm:$0xff]
        %v404 = vld [vmem:[#allocation3 + $0x8] sm:$0xff]
        %v405 = vand.u32 2147483647, %v337
        %v406 = vand.u32 2147483647, %v338
        %v407 = vand.u32 2147483647, %v339
        %v408 = vand.u32 2147483647, %v340
        %v409 = vand.u32 2147483647, %v341
        %v410 = vand.u32 2147483647, %v342
        %v411 = vand.u32 2147483647, %v343
        %v412 = vand.u32 2147483647, %v344
        %v421 = vcombine.low %v405, %v406
        %v422 = vcombine.low %v407, %v408
        %v424 = vunpack.c.l.s4 1983009808
        %v425 = vunpack.c.0.s8 %v424
        %v426 = vlaneseq
        %v427 = vshrl.u32 %v426, 7
        %v428 = vsub.s32 %v425, %v427
        %v429 = vrot.slane %v421, %v428
        %v431 = vunpack.c.l.s4 1983009808
        %v432 = vunpack.c.0.s8 %v431
        %v433 = vlaneseq
        %v434 = vshrl.u32 %v433, 7
        %v435 = vsub.s32 %v432, %v434
        %v436 = vrot.slane %v422, %v435
        %v437 = vcombine.low %v429, %v436
        %v438 = vcombine.low %v409, %v410
        %v439 = vcombine.low %v411, %v412
        %v441 = vunpack.c.l.s4 1983009808
        %v442 = vunpack.c.0.s8 %v441
        %v443 = vlaneseq
        %v444 = vshrl.u32 %v443, 7
        %v445 = vsub.s32 %v442, %v444
        %v446 = vrot.slane %v438, %v445
        %v448 = vunpack.c.l.s4 1983009808
        %v449 = vunpack.c.0.s8 %v448
        %v450 = vlaneseq
        %v451 = vshrl.u32 %v450, 7
        %v452 = vsub.s32 %v449, %v451
        %v453 = vrot.slane %v439, %v452
        %v454 = vcombine.low %v446, %v453
        %v457 = vadd.f32 %v403, %v437
        %v458 = vadd.f32 %v404, %v454
        %459 = vst [vmem:[#allocation3] sm:$0xff] %v457
        %460 = vst [vmem:[#allocation3 + $0x8] sm:$0xff] %v458
        // Predicated region
        $region41: #{tpu_custom_call.1} parent=27 // pred_check
          %p461 = pneg %p272
        $region42: #{tpu_custom_call.1} parent=27 // pred_check_branch
          %463 = sbr.rel (%p461) target = $region44
        $region43: #{tpu_custom_call.1} parent=27 // pred_region
          %v464 = vld [vmem:[#allocation2] sm:$0xff]
          %v465 = vld [vmem:[#allocation2 + $0x8] sm:$0xff]
          %v468 = vcombine.high %v464, %v464
          %v470 = vunpack.c.l.s4 1983009808
          %v471 = vunpack.c.0.s8 %v470
          %v472 = vlaneseq
          %v473 = vshrl.u32 %v472, 7
          %v474 = vsub.s32 %v471, %v473
          %v475 = vrot.slane %v464, %v474
          %v477 = vunpack.c.l.s4 1983009808
          %v478 = vunpack.c.0.s8 %v477
          %v479 = vlaneseq
          %v480 = vshrl.u32 %v479, 7
          %v481 = vsub.s32 %v478, %v480
          %v482 = vrot.slane %v468, %v481
          %v483 = vcombine.high %v475, %v475
          %v484 = vcombine.high %v482, %v482
          %v485 = vcombine.high %v465, %v465
          %v487 = vunpack.c.l.s4 1983009808
          %v488 = vunpack.c.0.s8 %v487
          %v489 = vlaneseq
          %v490 = vshrl.u32 %v489, 7
          %v491 = vsub.s32 %v488, %v490
          %v492 = vrot.slane %v465, %v491
          %v494 = vunpack.c.l.s4 1983009808
          %v495 = vunpack.c.0.s8 %v494
          %v496 = vlaneseq
          %v497 = vshrl.u32 %v496, 7
          %v498 = vsub.s32 %v495, %v497
          %v499 = vrot.slane %v485, %v498
          %v500 = vcombine.high %v492, %v492
          %v501 = vcombine.high %v499, %v499
          %vm510 = vcmask 1041408
          %v511 = vsel %vm510, %v475, 0.0
          %v512 = vsel %vm510, %v483, 0.0
          %v513 = vadd.f32 %v511, %v512
          %v514 = vsel %vm510, %v482, 0.0
          %v515 = vadd.f32 %v513, %v514
          %v516 = vsel %vm510, %v484, 0.0
          %v517 = vadd.f32 %v515, %v516
          %v518 = vsel %vm510, %v492, 0.0
          %v519 = vadd.f32 %v517, %v518
          %v520 = vsel %vm510, %v500, 0.0
          %v521 = vadd.f32 %v519, %v520
          %v522 = vsel %vm510, %v499, 0.0
          %v523 = vadd.f32 %v521, %v522
          %v524 = vsel %vm510, %v501, 0.0
          %v525 = vadd.f32 %v523, %v524
          %526 = vadd.xlane.f32.xlu0 %v525
          %v527 = vpop.xlane.xlu0 %526
          %v528 = vrot.slane %v527, 4
          %v529 = vadd.f32 %v527, %v528
          %v530 = vrot.slane %v529, 2
          %v531 = vadd.f32 %v529, %v530
          %v532 = vrot.slane %v531, 1
          %v533 = vadd.f32 %v531, %v532
          %s534 = vtos %v533
          %v535 = vstv %s534
          %536 = vst [vmem:[%s258] sm:$0xff] %v535
          %v537 = vld [vmem:[#allocation3] sm:$0xff]
          %v538 = vld [vmem:[#allocation3 + $0x8] sm:$0xff]
          %v541 = vcombine.high %v537, %v537
          %v543 = vunpack.c.l.s4 1983009808
          %v544 = vunpack.c.0.s8 %v543
          %v545 = vlaneseq
          %v546 = vshrl.u32 %v545, 7
          %v547 = vsub.s32 %v544, %v546
          %v548 = vrot.slane %v537, %v547
          %v550 = vunpack.c.l.s4 1983009808
          %v551 = vunpack.c.0.s8 %v550
          %v552 = vlaneseq
          %v553 = vshrl.u32 %v552, 7
          %v554 = vsub.s32 %v551, %v553
          %v555 = vrot.slane %v541, %v554
          %v556 = vcombine.high %v548, %v548
          %v557 = vcombine.high %v555, %v555
          %v558 = vcombine.high %v538, %v538
          %v560 = vunpack.c.l.s4 1983009808
          %v561 = vunpack.c.0.s8 %v560
          %v562 = vlaneseq
          %v563 = vshrl.u32 %v562, 7
          %v564 = vsub.s32 %v561, %v563
          %v565 = vrot.slane %v538, %v564
          %v567 = vunpack.c.l.s4 1983009808
          %v568 = vunpack.c.0.s8 %v567
          %v569 = vlaneseq
          %v570 = vshrl.u32 %v569, 7
          %v571 = vsub.s32 %v568, %v570
          %v572 = vrot.slane %v558, %v571
          %v573 = vcombine.high %v565, %v565
          %v574 = vcombine.high %v572, %v572
          %v583 = vsel %vm510, %v548, 0.0
          %v584 = vsel %vm510, %v556, 0.0
          %v585 = vadd.f32 %v583, %v584
          %v586 = vsel %vm510, %v555, 0.0
          %v587 = vadd.f32 %v585, %v586
          %v588 = vsel %vm510, %v557, 0.0
          %v589 = vadd.f32 %v587, %v588
          %v590 = vsel %vm510, %v565, 0.0
          %v591 = vadd.f32 %v589, %v590
          %v592 = vsel %vm510, %v573, 0.0
          %v593 = vadd.f32 %v591, %v592
          %v594 = vsel %vm510, %v572, 0.0
          %v595 = vadd.f32 %v593, %v594
          %v596 = vsel %vm510, %v574, 0.0
          %v597 = vadd.f32 %v595, %v596
          %598 = vadd.xlane.f32.xlu0 %v597
          %v599 = vpop.xlane.xlu0 %598
          %v600 = vrot.slane %v599, 4
          %v601 = vadd.f32 %v599, %v600
          %v602 = vrot.slane %v601, 2
          %v603 = vadd.f32 %v601, %v602
          %v604 = vrot.slane %v603, 1
          %v605 = vadd.f32 %v603, %v604
          %s606 = vtos %v605
          %v607 = vstv %s606
          %608 = vst [vmem:[%s265] sm:$0xff] %v607
        $region44: #{tpu_custom_call.1} parent=27 // pred_fallthru
          _
        %s609 = sand.u32 %s111, 1
        %s610 = scalar_lea.sflag [#allocation6], %s609
        %s611 = sand.u32 %s111, 1
        %s612 = smul.addr %s611, 8
        %s613 = scalar_lea.vmem [#allocation9], %s612
        %s614 = sand.u32 %s137, 1
        %s615 = scalar_lea.sflag [#allocation11], %s614
        %s616 = sand.u32 %s137, 1
        %s617 = smul.addr %s616, 8
        %s618 = scalar_lea.vmem [#allocation10], %s617
        // Predicated region
        $region45: #{tpu_custom_call.1} parent=27 // pred_check
          %p619 = pneg %p121
        $region46: #{tpu_custom_call.1} parent=27 // pred_check_branch
          %621 = sbr.rel (%p619) target = $region48
        $region47: #{tpu_custom_call.1} parent=27 // pred_region
          %s623 = ssub.s32 128, 128
          %624 = vsyncadd %s610, %s623
          %s625 = smul.addr %s31, 128
          %s626 = scalar_lea.hbm %s2, %s625
          %s628 = sshll.u32 %s613, 4
          %s629 = int_to_ptr.vmem [resolvable:$true] %s628
          %631 = dma.vmem_to_hbm [thread:$0]  %s629, 128, %s626, %s610
        $region48: #{tpu_custom_call.1} parent=27 // pred_fallthru
          _
        // Predicated region
        $region49: #{tpu_custom_call.1} parent=27 // pred_check
          %p632 = pneg %p147
        $region50: #{tpu_custom_call.1} parent=27 // pred_check_branch
          %634 = sbr.rel (%p632) target = $region52
        $region51: #{tpu_custom_call.1} parent=27 // pred_region
          %s636 = ssub.s32 128, 128
          %637 = vsyncadd %s615, %s636
          %s638 = smul.addr %s31, 128
          %s639 = scalar_lea.hbm %s3, %s638
          %s641 = sshll.u32 %s618, 4
          %s642 = int_to_ptr.vmem [resolvable:$true] %s641
          %644 = dma.vmem_to_hbm [thread:$0]  %s642, 128, %s639, %s615
        $region52: #{tpu_custom_call.1} parent=27 // pred_fallthru
          _
      $region28: #{tpu_custom_call.1} parent=5 // pred_fallthru
        _
      %p645 = scmp.le.s32.totalorder 2, %s22
      // Predicated region
      $region53: #{tpu_custom_call.1} parent=5 // pred_check
        %p646 = pneg %p645
      $region54: #{tpu_custom_call.1} parent=5 // pred_check_branch
        %648 = sbr.rel (%p646) target = $region56
      $region55: #{tpu_custom_call.1} parent=5 // pred_region
        %s649 = ssub.s32 %s22, 2
        // Predicated region
        $region57: #{tpu_custom_call.1} parent=55 // pred_check
          %p650 = pneg %p127
        $region58: #{tpu_custom_call.1} parent=55 // pred_check_branch
          %652 = sbr.rel (%p650) target = $region60
        $region59: #{tpu_custom_call.1} parent=55 // pred_region
          %s653 = sand.u32 %s112, 1
          %s654 = scalar_lea.sflag [#allocation6], %s653
          %s655 = sand.u32 %s112, 1
          %s656 = smul.addr %s655, 8
          %s657 = scalar_lea.vmem [#allocation9], %s656
          %658 = dma.done %s654, 128
        $region60: #{tpu_custom_call.1} parent=55 // pred_fallthru
          _
        // Predicated region
        $region61: #{tpu_custom_call.1} parent=55 // pred_check
          %p659 = pneg %p153
        $region62: #{tpu_custom_call.1} parent=55 // pred_check_branch
          %661 = sbr.rel (%p659) target = $region64
        $region63: #{tpu_custom_call.1} parent=55 // pred_region
          %s662 = sand.u32 %s138, 1
          %s663 = scalar_lea.sflag [#allocation11], %s662
          %s664 = sand.u32 %s138, 1
          %s665 = smul.addr %s664, 8
          %s666 = scalar_lea.vmem [#allocation10], %s665
          %667 = dma.done %s663, 128
        $region64: #{tpu_custom_call.1} parent=55 // pred_fallthru
          _
      $region56: #{tpu_custom_call.1} parent=5 // pred_fallthru
        _
    $region6: #{tpu_custom_call.1} parent=1 // loop_footer
      %s26 = sadd.s32 1, %s22
    $region7: #{tpu_custom_call.1} parent=1 // loop_footer_branch
      %21 = sbr.rel target = $region3
    $region8: #{tpu_custom_call.1} parent=1 // loop_exit
      _
    %668 = vsyncpa [#allocation5], 1
    %s669 = scalar_lea.sflag [#allocation5], 1
    %670 = vsyncpa %s669, 1
    %671 = vsyncpa [#allocation8], 1
    %s672 = scalar_lea.sflag [#allocation8], 1
    %673 = vsyncpa %s672, 1
    %674 = vsyncpa [#allocation6], 1
    %s675 = scalar_lea.sflag [#allocation6], 1
    %676 = vsyncpa %s675, 1
    %677 = vsyncpa [#allocation11], 1
    %s678 = scalar_lea.sflag [#allocation11], 1
    %679 = vsyncpa %s678, 1

</llo_original>
